<compile_context>
chip_gen: v6e
topology: v6e:2x2x1
jax: 0.10.0
libtpu: 0.0.40
codegen_flags: <defaults>
</compile_context>

<pallas_src>
import functools
import math
from functools import partial

import jax
import jax.numpy as jnp
from jax import lax
from jax.experimental import pallas as pl
from jax.experimental.pallas import tpu as pltpu

_INV_SQRT2 = 1.0 / math.sqrt(2.0)


def _gelu(x):
    # exact (erf-based) GELU, matching nn.GELU(approximate='none')
    return 0.5 * x * (1.0 + lax.erf(x * _INV_SQRT2))


@functools.lru_cache(maxsize=None)
def _pltpu_roll_is_forward():
    """One-time probe of pltpu.roll's rotation direction.

    Returns True iff pltpu.roll matches jnp.roll semantics (element i moves to
    index i + shift).  The depthwise tap shifts below are made
    convention-independent via this probe.
    """
    def probe(x_ref, o_ref):
        o_ref[...] = pltpu.roll(x_ref[...], 1, 1)

    x = lax.broadcasted_iota(jnp.int32, (8, 128), 1)
    y = pl.pallas_call(
        probe, out_shape=jax.ShapeDtypeStruct((8, 128), jnp.int32))(x)
    return int(y[0, 0]) == 127


def _lane_shift(v, off, forward):
    """Returns r with r[:, n] = v[:, (n + off) mod L]. Callers mask wrap-around."""
    if off == 0:
        return v
    size = v.shape[-1]
    shift = (-off) % size if forward else off % size
    return pltpu.roll(v, shift, 1)


def mlp_kernel(x_ref, mask_ref, w1_ref, b1_ref, s1_ref, t1_ref,
               dwk_ref, dwb_ref, w2_ref, b2_ref, o_ref,
               *, W, roll_forward):
    f32, bf16 = jnp.float32, jnp.bfloat16
    x = x_ref[...]                                     # (C, L), L = bt*H*W

    # ---- conv1: 1x1 conv (MXU, bf16 one-pass, f32 acc) + bias + GELU + BN1 --
    h = jnp.dot(w1_ref[...], x.astype(bf16),
                preferred_element_type=f32) + b1_ref[...]
    a = _gelu(h) * s1_ref[...] + t1_ref[...]           # (Ch, L)

    # ---- proj: 3x3 depthwise conv (stride 1, pad 1) via XLU lane rolls ------
    ok_l = mask_ref[0:1, :]      # w-1 exists (col >= 1)
    ok_r = mask_ref[1:2, :]      # w+1 exists (col <= W-2)
    ok_t = mask_ref[2:3, :]      # h-1 exists (row >= 1)
    ok_b = mask_ref[3:4, :]      # h+1 exists (row <= H-2)
    dwk = dwk_ref[...]                                 # (Ch, 9), t = kh*3 + kw

    acc = jnp.zeros_like(a)
    for dj, col_ok in ((-1, ok_l), (0, None), (1, ok_r)):
        cs = _lane_shift(a, dj, roll_forward)
        if col_ok is not None:
            cs = cs * col_ok
        for di, row_ok in ((-1, ok_t), (0, None), (1, ok_b)):
            rs = _lane_shift(cs, di * W, roll_forward)
            if row_ok is not None:
                rs = rs * row_ok
            t = (di + 1) * 3 + (dj + 1)                # PyTorch tap [kh, kw]
            acc = acc + rs * dwk[:, t:t + 1]

    y = _gelu(acc + dwb_ref[...] + a)                  # conv bias + residual

    # ---- conv2: 1x1 conv; proj_bn / conv2 bias / conv2 BN pre-folded --------
    o = jnp.dot(w2_ref[...], y.astype(bf16),
                preferred_element_type=f32) + b2_ref[...]
    o_ref[...] = o.astype(o_ref.dtype)


def _auto_batch_tile(B, N, lane_target=8192):
    """Largest divisor of B whose tile keeps the lane axis near lane_target.

    If N is not a multiple of 128 the lane dim must equal the full array dim,
    so the only legal tile is the whole batch.
    """
    if B * N <= lane_target or N % 128 != 0:
        return B
    best = 1
    for bt in range(1, B + 1):
        if B % bt == 0 and bt * N <= lane_target:
            best = bt
    return best


def mlp_pallas(x, p, H, W, *, batch_tile=None):
    """Forward pass of CMT Mlp.  x: (B, N=H*W, C) -> (B, N, C_out)."""
    B, N, C = x.shape
    assert N == H * W
    Ch = p["w1"].shape[0]
    Co = p["w2"].shape[0]
    bt = _auto_batch_tile(B, N) if batch_tile is None else batch_tile
    assert B % bt == 0
    L = bt * N
    bf16 = jnp.bfloat16

    # Channels-first, images concatenated along the lane axis (lane-dense).
    xt = jnp.transpose(x, (2, 0, 1)).reshape(C, B * N)

    # Fold proj_bn (s2,t2), conv2 bias and conv2 BN (s3,t3) into one matmul:
    #   out = s3*(w2 @ (s2*y + t2) + b2) + t3 = w2f @ y + b2f
    w2f = p["s3"] * p["w2"] * jnp.transpose(p["s2"])            # (Co, Ch)
    b2f = p["s3"] * (p["w2"] @ p["t2"] + p["b2"]) + p["t3"]     # (Co, 1)

    # Matmul weights go to the MXU in bf16 (f32 accumulation); cast once here.
    w1_bf = p["w1"].astype(bf16)
    w2f_bf = w2f.astype(bf16)

    # Depthwise taps as (Ch, 9), tap index t = kh*3 + kw.
    dwk = jnp.transpose(p["dwk"].reshape(9, Ch))

    # {0,1} boundary masks for the flat row-major n = h*W + w layout.  Batch
    # boundaries coincide with row boundaries, so the same masks also prevent
    # cross-image leakage when bt > 1.
    idx = jnp.arange(N, dtype=jnp.int32)
    col, row = idx % W, idx // W
    base = jnp.stack([col >= 1, col <= W - 2, row >= 1, row <= H - 2])
    masks = jnp.tile(base.astype(x.dtype), (1, bt))             # (4, L)

    roll_forward = _pltpu_roll_is_forward()
    full = lambda arr: pl.BlockSpec(arr.shape, lambda i: (0, 0))

    out = pl.pallas_call(
        partial(mlp_kernel, W=W, roll_forward=roll_forward),
        out_shape=jax.ShapeDtypeStruct((Co, B * N), x.dtype),
        grid=(B // bt,),
        in_specs=[
            pl.BlockSpec((C, L), lambda i: (0, i)),
            full(masks),
            full(w1_bf), full(p["b1"]), full(p["s1"]), full(p["t1"]),
            full(dwk), full(p["dwb"]),
            full(w2f_bf), full(b2f),
        ],
        out_specs=pl.BlockSpec((Co, L), lambda i: (0, i)),
        compiler_params=pltpu.CompilerParams(
            dimension_semantics=("parallel",)),
    )(xt, masks, w1_bf, p["b1"], p["s1"], p["t1"],
      dwk, p["dwb"], w2f_bf, b2f)

    return jnp.transpose(out.reshape(Co, B, N), (1, 2, 0))      # (B, N, Co)


def _bn_fold(keys, n):
    kg, kb, km, kv = keys
    gamma = 1.0 + 0.1 * jax.random.normal(kg, (n, 1), jnp.float32)
    beta = 0.1 * jax.random.normal(kb, (n, 1), jnp.float32)
    mean = 0.1 * jax.random.normal(km, (n, 1), jnp.float32)
    var = jax.random.uniform(kv, (n, 1), jnp.float32, minval=0.5, maxval=1.5)
    scale = gamma / jnp.sqrt(var + 1e-5)
    shift = beta - mean * scale
    return scale, shift


def init_params(key, C, Ch, Co):
    ks = jax.random.split(key, 18)
    bnd1 = 1.0 / math.sqrt(C)        # 1x1 conv fan_in = C
    bnd_dw = 1.0 / math.sqrt(9)      # depthwise fan_in = 1*3*3
    bnd2 = 1.0 / math.sqrt(Ch)       # 1x1 conv fan_in = Ch
    p = {}
    p["w1"] = jax.random.uniform(ks[0], (Ch, C), jnp.float32, -bnd1, bnd1)
    p["b1"] = jax.random.uniform(ks[1], (Ch, 1), jnp.float32, -bnd1, bnd1)
    p["s1"], p["t1"] = _bn_fold(ks[2:6], Ch)
    p["dwk"] = jax.random.uniform(ks[6], (3, 3, Ch), jnp.float32, -bnd_dw, bnd_dw)
    p["dwb"] = jax.random.uniform(ks[7], (Ch, 1), jnp.float32, -bnd_dw, bnd_dw)
    p["s2"], p["t2"] = _bn_fold(ks[8:12], Ch)
    p["w2"] = jax.random.uniform(ks[12], (Co, Ch), jnp.float32, -bnd2, bnd2)
    p["b2"] = jax.random.uniform(ks[13], (Co, 1), jnp.float32, -bnd2, bnd2)
    p["s3"], p["t3"] = _bn_fold(ks[14:18], Co)
    return p


def mlp_reference(x, p, H, W):
    """Plain-JAX reference with *unfused* BN / bias and lax.conv depthwise.

    Matmul inputs are cast to bf16 (f32 accumulation) to mirror the TPU MXU
    numerics of the kernel; everything else is f32.
    """
    B, N, C = x.shape
    f32, bf16 = jnp.float32, jnp.bfloat16
    gelu = lambda v: jax.nn.gelu(v, approximate=False)

    h = jnp.einsum("bnc,hc->bnh", x.astype(bf16), p["w1"].astype(bf16),
                   preferred_element_type=f32) + p["b1"][:, 0]
    a = gelu(h) * p["s1"][:, 0] + p["t1"][:, 0]
    Ch = a.shape[-1]

    dw = lax.conv_general_dilated(
        a.reshape(B, H, W, Ch), p["dwk"].reshape(3, 3, 1, Ch),
        window_strides=(1, 1), padding=((1, 1), (1, 1)),
        dimension_numbers=("NHWC", "HWIO", "NHWC"),
        feature_group_count=Ch, precision=lax.Precision.HIGHEST)
    y = gelu(dw.reshape(B, N, Ch) + p["dwb"][:, 0] + a)

    yb = y * p["s2"][:, 0] + p["t2"][:, 0]
    o = jnp.einsum("bnh,oh->bno", yb.astype(bf16), p["w2"].astype(bf16),
                   preferred_element_type=f32) + p["b2"][:, 0]
    return o * p["s3"][:, 0] + p["t3"][:, 0]


if __name__ == "__main__":
    B, C, H, W = 2, 4, 16, 16
    hidden, out_features = 32, C     # out_features defaults to in_features
    N = H * W

    key = jax.random.PRNGKey(0)
    kx, kp = jax.random.split(key)
    x = jax.random.normal(kx, (B, N, C), jnp.float32)
    params = init_params(kp, C, hidden, out_features)

    y = jax.block_until_ready(mlp_pallas(x, params, H, W))
    y_ref = jax.block_until_ready(mlp_reference(x, params, H, W))

    assert y.shape == (B, N, out_features), y.shape
    # Kernel matmuls run as bf16 MXU passes with f32 accumulation and the
    # conv2 epilogue is algebraically refolded, so agreement with the unfused
    # reference is at the ~1e-2 (bf16) level rather than f32-exact.
    err = float(jnp.max(jnp.abs(y - y_ref)))
    assert err < 5e-2, f"max abs diff too large: {err}"
    print("KERNEL_OK")
</pallas_src>

<mosaic_0001>
module attributes {stable_mosaic.version = 11 : i64} {
  func.func @probe(%arg0: memref<8x128xi32, #tpu.memory_space<vmem>>, %arg1: memref<8x128xi32, #tpu.memory_space<vmem>>) attributes {dimension_semantics = [], scalar_prefetch = 0 : i64, scratch_operands = 0 : i64, tpu.core_type = #tpu.core_type<tc>} {
    %c0 = arith.constant 0 : index
    %c0_0 = arith.constant 0 : index
    %0 = vector.load %arg0[%c0, %c0_0] : memref<8x128xi32, #tpu.memory_space<vmem>>, vector<8x128xi32>
    %c1_i32 = arith.constant 1 : i32
    %1 = tpu.dynamic_rotate %0 by %c1_i32 dim 1 : vector<8x128xi32>, i32 -> vector<8x128xi32>
    %c0_1 = arith.constant 0 : index
    %c0_2 = arith.constant 0 : index
    %2 = vector.load %arg1[%c0_1, %c0_2] : memref<8x128xi32, #tpu.memory_space<vmem>>, vector<8x128xi32>
    tpu.vector_store %arg1[%c0_1, %c0_2], %1 {strides = array<i32>} : memref<8x128xi32, #tpu.memory_space<vmem>>, vector<8x128xi32>,
    return
  }
}

</mosaic_0001>

<llo_original>
// kernel: tpu_custom_call.1
$region0: #{tpu_custom_call.1}
  #allocation0 [shape = 'u32[]', space=smem, size = 0x4, offset = 0x4, fixed_abs, tag = 'smem constant byte address 0x4 - core index']
  #allocation1 [shape = 'u32[144,128]{1,0:T(1,128)}', space=vmem, size = 0x12000, scoped, tag = 'internal scratch']
  %s0 = inlined_call_operand.hbm [shape: s32[8,128], index: 0, kind: input, shape index: {}]
  %s1 = inlined_call_operand.hbm [shape: s32[8,128], index: 1, kind: output, shape index: {}]
  %s2 = sld [smem:[#allocation0]]
  $region18: #{tpu_custom_call.1} parent=0
    _
  %s4 = ssub.s32 1, %s2
  %s5 = scalar_select 0, %s4, %s2
  $region1: #{tpu_custom_call.1} parent=0
    #allocation2 [shape = 'u8[4096]{0}', space=vmem, size = 0x1000, scoped, tag = 'input window, operand 0, single buffered']
    #allocation3 [shape = 's32[1]{0}', space=sflag, size = 0x4, scoped, tag = 'scoped memory for tpu_custom_call.1']
    #allocation4 [shape = 's32[1]{0}', space=sflag, size = 0x4, scoped, tag = 'scoped memory for tpu_custom_call.1']
    #allocation5 [shape = 'u8[4096]{0}', space=vmem, size = 0x1000, scoped, tag = 'output window, operand 0, single buffered']
    %6 = vsyncpa [#allocation3], 0
    %7 = vsyncpa [#allocation4], 0
    // Predicated region
    $region2: #{tpu_custom_call.1} parent=1 // pred_check
      _
    $region3: #{tpu_custom_call.1} parent=1 // pred_check_branch
      %9 = sbr.rel (0) target = $region5
    $region4: #{tpu_custom_call.1} parent=1 // pred_region
      %s11 = ssub.s32 128, 128
      %12 = vsyncadd [#allocation3], %s11
      %s14 = sshll.u32 [#allocation2], 4
      %s15 = int_to_ptr.vmem [resolvable:$true] %s14
      %17 = dma.hbm_to_vmem [thread:$0]  %s0, 128, %s15, [#allocation3]
    $region5: #{tpu_custom_call.1} parent=1 // pred_fallthru
      _
    // Predicated region
    $region6: #{tpu_custom_call.1} parent=1 // pred_check
      _
    $region7: #{tpu_custom_call.1} parent=1 // pred_check_branch
      %19 = sbr.rel (0) target = $region9
    $region8: #{tpu_custom_call.1} parent=1 // pred_region
      %20 = dma.done [#allocation3], 128
    $region9: #{tpu_custom_call.1} parent=1 // pred_fallthru
      _
    %v21 = vld [vmem:[#allocation2] sm:$0xff]
    %22 = vrot.lane.b32.xlu0 %v21, 1
    %v23 = vpop.permute.xlu0 %22
    %24 = vst [vmem:[#allocation5] sm:$0xff] %v23
    // Predicated region
    $region10: #{tpu_custom_call.1} parent=1 // pred_check
      _
    $region11: #{tpu_custom_call.1} parent=1 // pred_check_branch
      %26 = sbr.rel (0) target = $region13
    $region12: #{tpu_custom_call.1} parent=1 // pred_region
      %s28 = ssub.s32 128, 128
      %29 = vsyncadd [#allocation4], %s28
      %s31 = sshll.u32 [#allocation5], 4
      %s32 = int_to_ptr.vmem [resolvable:$true] %s31
      %34 = dma.vmem_to_hbm [thread:$0]  %s32, 128, %s1, [#allocation4]
    $region13: #{tpu_custom_call.1} parent=1 // pred_fallthru
      _
    // Predicated region
    $region14: #{tpu_custom_call.1} parent=1 // pred_check
      _
    $region15: #{tpu_custom_call.1} parent=1 // pred_check_branch
      %36 = sbr.rel (0) target = $region17
    $region16: #{tpu_custom_call.1} parent=1 // pred_region
      %37 = dma.done [#allocation4], 128
    $region17: #{tpu_custom_call.1} parent=1 // pred_fallthru
      _
    %38 = vsyncpa [#allocation3], 1
    %39 = vsyncpa [#allocation4], 1

</llo_original>
